<compile_context>
chip_gen: v5e
topology: v5e:2x2
jax: 0.10.0
libtpu: 0.0.40
codegen_flags: <defaults>
</compile_context>

<pallas_src>
import functools

import jax
import jax.numpy as jnp
from jax import lax
from jax.experimental import pallas as pl
from jax.experimental.pallas import tpu as pltpu


# ----------------------------------------------------------------------------
# Linear kernels: y = x @ w_t (+ b), f32 accumulation on the MXU.
# ----------------------------------------------------------------------------
def _linear_bias_kernel(x_ref, wt_ref, b_ref, o_ref):
    acc = jnp.dot(x_ref[...], wt_ref[...], preferred_element_type=jnp.float32)
    o_ref[...] = (acc + b_ref[...]).astype(o_ref.dtype)


def _linear_kernel(x_ref, wt_ref, o_ref):
    o_ref[...] = jnp.dot(x_ref[...], wt_ref[...],
                         preferred_element_type=jnp.float32).astype(o_ref.dtype)


def _pick_tile_m(m, cin, cout, itemsize, vmem_budget_bytes=12 * 1024 * 1024):
    """M-tile: large enough to pipeline (>=256..512 rows when possible), small enough
    that double-buffered x/out blocks + the resident weight block stay well inside the
    default scoped-VMEM limit on every TPU generation (v7x has only 64 MiB physical)."""
    if m <= 512:
        return m                                   # a full-extent block is always legal
    cap = 512
    per_row = 2 * (cin + cout) * itemsize          # x + out rows, double buffered
    while cap > 8 and cap * per_row > vmem_budget_bytes:
        cap //= 2
    for tm in range(cap - cap % 8, 7, -8):         # multiples of 8 (sublane rule)
        if m % tm == 0:
            return tm
    return m                                       # fallback: single full block


def linear_pallas(x2d, wt, b=None, *, out_dtype=jnp.float32):
    """x2d: (M, Cin); wt: (Cin, Cout) (already transposed); b: (Cout,) or None."""
    M, Cin = x2d.shape
    Cout = wt.shape[1]
    tm = _pick_tile_m(M, Cin, Cout, jnp.dtype(x2d.dtype).itemsize)
    grid = (M // tm,)

    in_specs = [
        pl.BlockSpec((tm, Cin), lambda i: (i, 0)),      # activation tile (pipelined)
        pl.BlockSpec((Cin, Cout), lambda i: (0, 0)),    # weight block stays resident
    ]
    args = [x2d, wt]
    if b is not None:
        in_specs.append(pl.BlockSpec((1, Cout), lambda i: (0, 0)))
        args.append(b.reshape(1, Cout))
        kernel = _linear_bias_kernel
    else:
        kernel = _linear_kernel                          # no zero-bias DMA stream

    return pl.pallas_call(
        kernel,
        out_shape=jax.ShapeDtypeStruct((M, Cout), out_dtype),
        grid=grid,
        in_specs=in_specs,
        out_specs=pl.BlockSpec((tm, Cout), lambda i: (i, 0)),
        compiler_params=pltpu.CompilerParams(dimension_semantics=("parallel",)),
    )(*args)


# ----------------------------------------------------------------------------
# Attention kernel: one batch element per grid step, all heads in-kernel.
#   q/k/v/out refs are lane-dense (N, C) slabs; head h lives at lanes [h*D, (h+1)*D).
#   EPEG depthwise conv along the query axis of the scores is a banded-matrix matmul.
# ----------------------------------------------------------------------------
def _attention_kernel(q_ref, k_ref, v_ref, cm_ref, peb_ref, o_ref, *, num_heads, scale):
    N, C = q_ref.shape
    D = C // num_heads
    for h in range(num_heads):                      # static loop, unrolled at trace time
        sl = slice(h * D, (h + 1) * D)
        q = q_ref[:, sl] * scale                    # fold scale into q (N, D)
        k = k_ref[:, sl]
        v = v_ref[:, sl]

        # scores: q @ k^T, f32 accumulation on the MXU
        s = lax.dot_general(q, k, (((1,), (1,)), ((), ())),
                            preferred_element_type=jnp.float32)          # (N, N)

        # EPEG positional encoding: pe = conv_mat[h] @ s + bias[h]
        pe = jnp.dot(cm_ref[h], s, preferred_element_type=jnp.float32)   # (N, N)
        logits = s + pe + peb_ref[h]

        # numerically stable softmax; denominator via approx reciprocal (EUP slot)
        logits = logits - jnp.max(logits, axis=-1, keepdims=True)
        p = jnp.exp(logits)
        inv = pl.reciprocal(jnp.sum(p, axis=-1, keepdims=True), approx=True)
        p = p * inv

        o_h = jnp.dot(p.astype(v.dtype), v, preferred_element_type=jnp.float32)  # (N, D)
        o_ref[:, sl] = o_h.astype(o_ref.dtype)


def attention_pallas(q, k, v, conv_mat, pe_b, num_heads, scale):
    """q/k/v: (B, N, C) lane-dense slabs; conv_mat: (H, N, N); pe_b: (H,). Returns (B, N, C) f32."""
    B, N, C = q.shape
    H = num_heads
    kernel = functools.partial(_attention_kernel, num_heads=H, scale=scale)
    return pl.pallas_call(
        kernel,
        out_shape=jax.ShapeDtypeStruct((B, N, C), jnp.float32),
        grid=(B,),
        in_specs=[
            pl.BlockSpec((None, N, C), lambda b: (b, 0, 0)),   # q (batch dim squeezed)
            pl.BlockSpec((None, N, C), lambda b: (b, 0, 0)),   # k
            pl.BlockSpec((None, N, C), lambda b: (b, 0, 0)),   # v
            pl.BlockSpec((H, N, N), lambda b: (0, 0, 0)),      # EPEG banded conv matrices
            pl.BlockSpec(memory_space=pltpu.MemorySpace.SMEM), # EPEG per-head bias scalars
        ],
        out_specs=pl.BlockSpec((None, N, C), lambda b: (b, 0, 0)),  # lane-dense (N, C) store
        compiler_params=pltpu.CompilerParams(dimension_semantics=("parallel",)),
    )(q, k, v, conv_mat, pe_b)


# ----------------------------------------------------------------------------
# EPEG conv expressed as a banded matrix (built once per forward, plain JAX glue):
#   conv_mat[h, i, r] = pe_w[h, r - i + P]  if |r - i| <= P else 0
#   so that (conv_mat[h] @ s)[i, j] = sum_t pe_w[h, t] * s[i + t - P, j]  (zero padded),
# which is exactly Conv2d(H, H, (K, 1), padding=(P, 0), groups=H) applied to the scores.
# ----------------------------------------------------------------------------
def _build_epeg_conv_matrix(pe_w, n):
    H, K = pe_w.shape
    P = K // 2
    i = jnp.arange(n)[:, None]
    r = jnp.arange(n)[None, :]
    t = r - i + P
    valid = (t >= 0) & (t < K)
    t_c = jnp.clip(t, 0, K - 1)
    mat = pe_w[:, t_c] * valid[None].astype(pe_w.dtype)     # (H, n, n)
    return mat.astype(jnp.float32)


# ----------------------------------------------------------------------------
# InnerAttention forward (Pallas version).
# ----------------------------------------------------------------------------
def inner_attention_pallas(x, params, num_heads, *, compute_dtype=jnp.float32):
    B, N, C = x.shape
    H = num_heads
    D = C // H
    scale = D ** (-0.5)

    # weights transposed (and optionally cast for the MXU) once per forward
    wqkv_t = jnp.transpose(params["qkv_w"]).astype(compute_dtype)    # (C, 3C)
    wproj_t = jnp.transpose(params["proj_w"]).astype(compute_dtype)  # (C, C)

    # fused qkv projection for all tokens
    x2d = x.reshape(B * N, C).astype(compute_dtype)
    qkv2d = linear_pallas(x2d, wqkv_t, params["qkv_b"])              # (B*N, 3C) f32

    # lane-dense per-stream slabs; head h occupies lanes [h*D, (h+1)*D)
    q = qkv2d[:, 0 * C:1 * C].reshape(B, N, C).astype(compute_dtype)
    k = qkv2d[:, 1 * C:2 * C].reshape(B, N, C).astype(compute_dtype)
    v = qkv2d[:, 2 * C:3 * C].reshape(B, N, C).astype(compute_dtype)

    conv_mat = _build_epeg_conv_matrix(params["pe_w"], N)            # (H, N, N) f32
    attn_out = attention_pallas(q, k, v, conv_mat, params["pe_b"], H, scale)  # (B, N, C) f32

    # output projection (attn_drop / proj_drop are identity at p = 0.0)
    out2d = linear_pallas(attn_out.reshape(B * N, C).astype(compute_dtype),
                          wproj_t, params["proj_b"])
    return out2d.reshape(B, N, C)


# ----------------------------------------------------------------------------
# Pure-JAX reference (mirrors the PyTorch forward with default config).
# ----------------------------------------------------------------------------
def inner_attention_ref(x, params, num_heads):
    B, N, C = x.shape
    D = C // num_heads
    scale = D ** (-0.5)

    qkv = x @ params["qkv_w"].T + params["qkv_b"]                    # (B, N, 3C)
    qkv = qkv.reshape(B, N, 3, num_heads, D).transpose(2, 0, 3, 1, 4)
    q, k, v = qkv[0], qkv[1], qkv[2]                                 # (B, H, N, D)
    q = q * scale
    attn = jnp.einsum("bhqd,bhkd->bhqk", q, k)                       # (B, H, N, N)

    # EPEG: depthwise Conv2d(H, H, (K, 1), padding=(K//2, 0), groups=H, bias=True)
    pe_w, pe_b = params["pe_w"], params["pe_b"]
    K = pe_w.shape[1]
    P = K // 2
    ap = jnp.pad(attn, ((0, 0), (0, 0), (P, P), (0, 0)))
    pe = jnp.broadcast_to(pe_b[None, :, None, None], attn.shape)
    for t in range(K):
        pe = pe + pe_w[:, t][None, :, None, None] * ap[:, :, t:t + N, :]
    attn = attn + pe

    attn = jax.nn.softmax(attn, axis=-1)
    out = jnp.einsum("bhqk,bhkd->bhqd", attn, v)
    out = out.transpose(0, 2, 1, 3).reshape(B, N, C)
    return out @ params["proj_w"].T + params["proj_b"]


# ----------------------------------------------------------------------------
if __name__ == "__main__":
    key = jax.random.PRNGKey(0)
    B, N, C, H = 2, 16, 32, 8          # head_dim = 4
    epeg_k = 15                        # module default

    ks = jax.random.split(key, 7)
    x = jax.random.normal(ks[0], (B, N, C), jnp.float32)
    params = {
        "qkv_w": jax.random.normal(ks[1], (3 * C, C), jnp.float32) * 0.05,
        "qkv_b": jax.random.normal(ks[2], (3 * C,), jnp.float32) * 0.05,
        "proj_w": jax.random.normal(ks[3], (C, C), jnp.float32) * 0.05,
        "proj_b": jax.random.normal(ks[4], (C,), jnp.float32) * 0.05,
        "pe_w": jax.random.normal(ks[5], (H, epeg_k), jnp.float32) * 0.1,
        "pe_b": jax.random.normal(ks[6], (H,), jnp.float32) * 0.1,
    }

    ref = inner_attention_ref(x, params, H)

    # f32-operand path (strict check)
    out = jax.block_until_ready(inner_attention_pallas(x, params, H))
    assert out.shape == (B, N, C), out.shape
    err = float(jnp.max(jnp.abs(out - ref)))
    assert jnp.allclose(out, ref, atol=5e-3, rtol=5e-3), err

    # bf16-operand MXU path (v6e/v7x feedback) — loose check against the f32 reference
    out_bf16 = jax.block_until_ready(
        inner_attention_pallas(x, params, H, compute_dtype=jnp.bfloat16))
    err_bf16 = float(jnp.max(jnp.abs(out_bf16 - ref)))
    assert jnp.allclose(out_bf16, ref, atol=5e-2, rtol=5e-2), err_bf16

    print("KERNEL_OK")
</pallas_src>

<mosaic_0001>
module attributes {stable_mosaic.version = 11 : i64} {
  func.func @_linear_bias_kernel(%arg0: i32, %arg1: memref<32x32xf32, #tpu.memory_space<vmem>>, %arg2: memref<32x96xf32, #tpu.memory_space<vmem>>, %arg3: memref<1x96xf32, #tpu.memory_space<vmem>>, %arg4: memref<32x96xf32, #tpu.memory_space<vmem>>) attributes {dimension_semantics = [#tpu.dimension_semantics<parallel>], iteration_bounds = array<i64: 1>, scalar_prefetch = 0 : i64, scratch_operands = 0 : i64, tpu.core_type = #tpu.core_type<tc>, window_params = [{transform_indices = @transform_0, window_bounds = array<i64: 32, 32>}, {pipeline_mode = #tpu.pipeline_mode<synchronous>, transform_indices = @transform_1, window_bounds = array<i64: 32, 96>}, {pipeline_mode = #tpu.pipeline_mode<synchronous>, transform_indices = @transform_2, window_bounds = array<i64: 1, 96>}, {transform_indices = @transform_3, window_bounds = array<i64: 32, 96>}]} {
    %c0 = arith.constant 0 : index
    %c0_0 = arith.constant 0 : index
    %0 = vector.load %arg1[%c0, %c0_0] : memref<32x32xf32, #tpu.memory_space<vmem>>, vector<32x32xf32>
    %c0_1 = arith.constant 0 : index
    %c0_2 = arith.constant 0 : index
    %1 = vector.load %arg2[%c0_1, %c0_2] : memref<32x96xf32, #tpu.memory_space<vmem>>, vector<32x96xf32>
    %cst = arith.constant dense<0.000000e+00> : vector<32x96xf32>
    %2 = tpu.matmul %0, %1, %cst {dimension_numbers = #tpu.dot_dimension_numbers<[1], [0], [0], [1], [0, 0, 1, 1], [], []>} : vector<32x32xf32>, vector<32x96xf32>, vector<32x96xf32> -> vector<32x96xf32>
    %c0_3 = arith.constant 0 : index
    %c0_4 = arith.constant 0 : index
    %3 = vector.load %arg3[%c0_3, %c0_4] : memref<1x96xf32, #tpu.memory_space<vmem>>, vector<1x96xf32>
    %4 = vector.broadcast %3 : vector<1x96xf32> to vector<32x96xf32>
    %5 = arith.addf %2, %4 : vector<32x96xf32>
    %c0_5 = arith.constant 0 : index
    %c0_6 = arith.constant 0 : index
    %6 = vector.load %arg4[%c0_5, %c0_6] : memref<32x96xf32, #tpu.memory_space<vmem>>, vector<32x96xf32>
    tpu.vector_store %arg4[%c0_5, %c0_6], %5 {strides = array<i32>} : memref<32x96xf32, #tpu.memory_space<vmem>>, vector<32x96xf32>,
    return
  }
  func.func @transform_0(%arg0: i32) -> (i32, i32) {
    %c0_i32 = arith.constant 0 : i32
    %c0_i32_0 = arith.constant 0 : i32
    return %arg0, %c0_i32 : i32, i32
  }
  func.func @transform_1(%arg0: i32) -> (i32, i32) {
    %c0_i32 = arith.constant 0 : i32
    %c0_i32_0 = arith.constant 0 : i32
    %c0_i32_1 = arith.constant 0 : i32
    return %c0_i32, %c0_i32_0 : i32, i32
  }
  func.func @transform_2(%arg0: i32) -> (i32, i32) {
    %c0_i32 = arith.constant 0 : i32
    %c0_i32_0 = arith.constant 0 : i32
    %c0_i32_1 = arith.constant 0 : i32
    return %c0_i32, %c0_i32_0 : i32, i32
  }
  func.func @transform_3(%arg0: i32) -> (i32, i32) {
    %c0_i32 = arith.constant 0 : i32
    %c0_i32_0 = arith.constant 0 : i32
    return %arg0, %c0_i32 : i32, i32
  }
}

</mosaic_0001>

<llo_original>
// kernel: tpu_custom_call.1
$region0: #{tpu_custom_call.1}
  #allocation0 [shape = 'u32[]', space=smem, size = 0x4, offset = 0x4, fixed_abs, tag = 'smem constant byte address 0x4 - core index']
  #allocation1 [shape = 'u32[72,128]{1,0:T(1,128)}', space=vmem, size = 0x9000, scoped, tag = 'internal scratch']
  %s0 = inlined_call_operand.hbm [shape: f32[32,32], index: 0, kind: input, shape index: {}]
  %s1 = inlined_call_operand.hbm [shape: f32[32,96], index: 1, kind: input, shape index: {}]
  %s2 = inlined_call_operand.vmem [shape: f32[1,96], index: 2, kind: input, shape index: {}]
  %s3 = inlined_call_operand.hbm [shape: f32[32,96], index: 3, kind: output, shape index: {}]
  %s4 = sld [smem:[#allocation0]]
  $region30: #{tpu_custom_call.1} parent=0
    _
  %s6 = ssub.s32 1, %s4
  %s7 = scalar_select 0, %s6, %s4
  $region1: #{tpu_custom_call.1} parent=0
    #allocation2 [shape = 'u8[16384]{0}', space=vmem, size = 0x4000, scoped, tag = 'input window, operand 0, single buffered']
    #allocation3 [shape = 's32[1]{0}', space=sflag, size = 0x4, scoped, tag = 'scoped memory for tpu_custom_call.1']
    #allocation4 [shape = 's32[1]{0}', space=sflag, size = 0x4, scoped, tag = 'scoped memory for tpu_custom_call.1']
    #allocation5 [shape = 'u8[16384]{0}', space=vmem, size = 0x4000, scoped, tag = 'input window, operand 1, single buffered']
    #allocation6 [shape = 's32[1]{0}', space=sflag, size = 0x4, scoped, tag = 'scoped memory for tpu_custom_call.1']
    #allocation7 [shape = 'u8[16384]{0}', space=vmem, size = 0x4000, scoped, tag = 'output window, operand 0, single buffered']
    %8 = vsyncpa [#allocation3], 0
    %9 = vsyncpa [#allocation6], 0
    %10 = vsyncpa [#allocation4], 0
    // Predicated region
    $region2: #{tpu_custom_call.1} parent=1 // pred_check
      _
    $region3: #{tpu_custom_call.1} parent=1 // pred_check_branch
      %12 = sbr.rel (0) target = $region5
    $region4: #{tpu_custom_call.1} parent=1 // pred_region
      %14 = vsyncadd [#allocation3], 0
      %s15 = sshll.u32 %s0, 4
      %s16 = int_to_ptr.hbm [resolvable:$true] %s15
      %s17 = sshll.u32 [#allocation2], 4
      %s18 = int_to_ptr.vmem [resolvable:$true] %s17
      %23 = dma.hbm_to_vmem [thread:$0]  %s16, 512, %s18, [#allocation3], 128, 128, 8
    $region5: #{tpu_custom_call.1} parent=1 // pred_fallthru
      _
    // Predicated region
    $region6: #{tpu_custom_call.1} parent=1 // pred_check
      _
    $region7: #{tpu_custom_call.1} parent=1 // pred_check_branch
      %25 = sbr.rel (0) target = $region9
    $region8: #{tpu_custom_call.1} parent=1 // pred_region
      %27 = vsyncadd [#allocation6], 0
      %s28 = sshll.u32 %s1, 4
      %s29 = int_to_ptr.hbm [resolvable:$true] %s28
      %s30 = sshll.u32 [#allocation5], 4
      %s31 = int_to_ptr.vmem [resolvable:$true] %s30
      %36 = dma.hbm_to_vmem [thread:$0]  %s29, 512, %s31, [#allocation6], 128, 128, 8
    $region9: #{tpu_custom_call.1} parent=1 // pred_fallthru
      _
    // Predicated region
    $region10: #{tpu_custom_call.1} parent=1 // pred_check
      _
    $region11: #{tpu_custom_call.1} parent=1 // pred_check_branch
      %38 = sbr.rel (0) target = $region13
    $region12: #{tpu_custom_call.1} parent=1 // pred_region
      _
    $region13: #{tpu_custom_call.1} parent=1 // pred_fallthru
      _
    // Predicated region
    $region14: #{tpu_custom_call.1} parent=1 // pred_check
      _
    $region15: #{tpu_custom_call.1} parent=1 // pred_check_branch
      %40 = sbr.rel (0) target = $region17
    $region16: #{tpu_custom_call.1} parent=1 // pred_region
      %42 = dma.done [#allocation3], 512
    $region17: #{tpu_custom_call.1} parent=1 // pred_fallthru
      _
    // Predicated region
    $region18: #{tpu_custom_call.1} parent=1 // pred_check
      _
    $region19: #{tpu_custom_call.1} parent=1 // pred_check_branch
      %44 = sbr.rel (0) target = $region21
    $region20: #{tpu_custom_call.1} parent=1 // pred_region
      %46 = dma.done [#allocation6], 512
    $region21: #{tpu_custom_call.1} parent=1 // pred_fallthru
      _
    %v47 = vld [vmem:[#allocation2] sm:$0xff]
    %v48 = vld [vmem:[#allocation2 + $0x8] sm:$0xff]
    %v49 = vld [vmem:[#allocation2 + $0x10] sm:$0xff]
    %v50 = vld [vmem:[#allocation2 + $0x18] sm:$0xff]
    %v51 = vld [vmem:[#allocation5] sm:$0xff]
    %v52 = vld [vmem:[#allocation5 + $0x8] sm:$0xff]
    %v53 = vld [vmem:[#allocation5 + $0x10] sm:$0xff]
    %v54 = vld [vmem:[#allocation5 + $0x18] sm:$0xff]
    %v55 = vld [vmem:[%s2] sm:$0x1]
    %v57 = vperm.slane %v55, 0
    %vm59 = vcmask 261120
    %v61 = vsel %vm59, %v47, 0
    %v64 = vsel %vm59, %v48, 0
    %v67 = vsel %vm59, %v49, 0
    %v70 = vsel %vm59, %v50, 0
    %72 = vmatpush.msra.mxu0 0.0
    %73 = vmatpush.msra.mxu0 0.0
    %74 = vmatpush.msra.mxu0 0.0
    %75 = vmatpush.msra.mxu0 0.0
    %76 = vmatpush.msra.mxu0 0.0
    %77 = vmatpush.msra.mxu0 0.0
    %78 = vmatpush.msra.mxu0 0.0
    %79 = vmatpush.msra.mxu0 0.0
    %80 = vmatpush.msra.mxu0 0.0
    %81 = vmatpush.msra.mxu0 0.0
    %82 = vmatpush.msra.mxu0 0.0
    %83 = vmatpush.msra.mxu0 0.0
    %84 = vmatpush.msra.mxu0 %v54
    %85 = vmatpush.msra.mxu0 %v53
    %86 = vmatpush.msra.mxu0 %v52
    %87 = vmatpush.msra.mxu0 %v51
    %88 = vmatmul.f32.gmra.mxu0 %v61
    %v89 = vpop.f32.mrf.mxu0
    %v90 = vadd.f32 %v57, %v89
    %91 = vmatmul.f32.gmra.mxu0 %v64
    %v92 = vpop.f32.mrf.mxu0
    %v93 = vadd.f32 %v57, %v92
    %94 = vmatmul.f32.gmra.mxu0 %v67
    %v95 = vpop.f32.mrf.mxu0
    %v96 = vadd.f32 %v57, %v95
    %97 = vmatmul.f32.gmra.mxu0 %v70
    %v98 = vpop.f32.mrf.mxu0
    %v99 = vadd.f32 %v57, %v98
    %100 = vdwg.mxu0
    %vm101 = vcmask 785408
    %102 = vst.msk [vmem:[#allocation7] sm:$0xff] %vm101, %v90
    %103 = vst.msk [vmem:[#allocation7 + $0x8] sm:$0xff] %vm101, %v93
    %104 = vst.msk [vmem:[#allocation7 + $0x10] sm:$0xff] %vm101, %v96
    %105 = vst.msk [vmem:[#allocation7 + $0x18] sm:$0xff] %vm101, %v99
    // Predicated region
    $region22: #{tpu_custom_call.1} parent=1 // pred_check
      _
    $region23: #{tpu_custom_call.1} parent=1 // pred_check_branch
      %107 = sbr.rel (0) target = $region25
    $region24: #{tpu_custom_call.1} parent=1 // pred_region
      %109 = vsyncadd [#allocation4], 0
      %s110 = sshll.u32 [#allocation7], 4
      %s111 = int_to_ptr.vmem [resolvable:$true] %s110
      %s112 = sshll.u32 %s3, 4
      %s113 = int_to_ptr.hbm [resolvable:$true] %s112
      %118 = dma.vmem_to_hbm [thread:$0]  %s111, 512, %s113, [#allocation4], 128, 128, 8
    $region25: #{tpu_custom_call.1} parent=1 // pred_fallthru
      _
    // Predicated region
    $region26: #{tpu_custom_call.1} parent=1 // pred_check
      _
    $region27: #{tpu_custom_call.1} parent=1 // pred_check_branch
      %120 = sbr.rel (0) target = $region29
    $region28: #{tpu_custom_call.1} parent=1 // pred_region
      %122 = dma.done [#allocation4], 512
    $region29: #{tpu_custom_call.1} parent=1 // pred_fallthru
      _
    %123 = vsyncpa [#allocation3], 1
    %124 = vsyncpa [#allocation6], 1
    %125 = vsyncpa [#allocation4], 1

</llo_original>
